<compile_context>
chip_gen: v7x
topology: tpu7x:2x2x1
jax: 0.10.0
libtpu: 0.0.40
codegen_flags: <defaults>
</compile_context>

<pallas_src>
import functools

import jax
import jax.numpy as jnp
from jax.experimental import pallas as pl
from jax.experimental.pallas import tpu as pltpu


def generator_kernel(x_ref, wt_ref, w_ref, y_ref, r_ref):
    """One batch tile, entirely in VMEM: y = x @ W^T ; recon = y @ W."""
    x = x_ref[...]
    y = jnp.dot(x, wt_ref[...], preferred_element_type=jnp.float32)
    y_ref[...] = y.astype(y_ref.dtype)
    r_ref[...] = jnp.dot(y, w_ref[...],
                         preferred_element_type=jnp.float32).astype(r_ref.dtype)


@functools.partial(jax.jit, static_argnames=("block_m",))
def generator_forward(x, weight, *, block_m=256):
    """x: [B, input_size] f32; weight: [output_size, input_size] (torch convention).

    Returns (y, recon): y = x @ weight.T  -> [B, output_size]
                        recon = y @ weight -> [B, input_size]
    """
    B, in_f = x.shape
    out_f, in_f_w = weight.shape
    assert in_f == in_f_w, "weight must be [output_size, input_size]"

    # block_m (256) is a multiple of 8; when B <= block_m the tile spans the full
    # batch dim, which also satisfies the (8,128) tiling rule.
    bm = B if B <= block_m else block_m
    grid = (pl.cdiv(B, bm),)

    wt = weight.T  # [in_f, out_f], transposed once here, resident in VMEM in-kernel

    y, recon = pl.pallas_call(
        generator_kernel,
        out_shape=(
            jax.ShapeDtypeStruct((B, out_f), x.dtype),
            jax.ShapeDtypeStruct((B, in_f), x.dtype),
        ),
        grid_spec=pl.GridSpec(
            grid=grid,
            in_specs=[
                pl.BlockSpec((bm, in_f), lambda i: (i, 0)),      # x batch tile
                pl.BlockSpec((in_f, out_f), lambda i: (0, 0)),   # W^T (resident)
                pl.BlockSpec((out_f, in_f), lambda i: (0, 0)),   # W   (resident)
            ],
            out_specs=(
                pl.BlockSpec((bm, out_f), lambda i: (i, 0)),     # y
                pl.BlockSpec((bm, in_f), lambda i: (i, 0)),      # recon
            ),
        ),
        compiler_params=pltpu.CompilerParams(
            dimension_semantics=("parallel",)),
    )(x, wt, weight)
    return y, recon


def init_weight(output_size, input_size):
    """Mirror nn.init.eye(self.map1.weight): identity-like [out, in] weight."""
    return jnp.eye(output_size, input_size, dtype=jnp.float32)


def reference_forward(x, weight):
    """Pure-JAX reference for correctness check."""
    y = x @ weight.T
    recon = y @ weight
    return y, recon


if __name__ == "__main__":
    key = jax.random.PRNGKey(0)
    k_x, k_w = jax.random.split(key)

    batch, input_size, output_size = 8, 16, 32
    x = jax.random.normal(k_x, (batch, input_size), jnp.float32)

    # Eye init per the module; small perturbation so the correctness check against
    # the pure-JAX reference is numerically non-trivial.
    weight = init_weight(output_size, input_size)
    weight = weight + 0.01 * jax.random.normal(k_w, weight.shape, jnp.float32)

    y, recon = generator_forward(x, weight)
    y = jax.block_until_ready(y)
    recon = jax.block_until_ready(recon)

    y_ref, r_ref = reference_forward(x, weight)
    assert y.shape == (batch, output_size)
    assert recon.shape == (batch, input_size)
    assert jnp.allclose(y, y_ref, atol=1e-5, rtol=1e-5)
    assert jnp.allclose(recon, r_ref, atol=1e-5, rtol=1e-5)

    print("KERNEL_OK")
</pallas_src>

<mosaic_0001>
module attributes {stable_mosaic.version = 11 : i64} {
  func.func @generator_kernel(%arg0: i32, %arg1: memref<8x16xf32, #tpu.memory_space<vmem>>, %arg2: memref<16x32xf32, #tpu.memory_space<vmem>>, %arg3: memref<32x16xf32, #tpu.memory_space<vmem>>, %arg4: memref<8x32xf32, #tpu.memory_space<vmem>>, %arg5: memref<8x16xf32, #tpu.memory_space<vmem>>) attributes {dimension_semantics = [#tpu.dimension_semantics<parallel>], iteration_bounds = array<i64: 1>, scalar_prefetch = 0 : i64, scratch_operands = 0 : i64, tpu.core_type = #tpu.core_type<tc>, window_params = [{transform_indices = @transform_0, window_bounds = array<i64: 8, 16>}, {pipeline_mode = #tpu.pipeline_mode<synchronous>, transform_indices = @transform_1, window_bounds = array<i64: 16, 32>}, {pipeline_mode = #tpu.pipeline_mode<synchronous>, transform_indices = @transform_2, window_bounds = array<i64: 32, 16>}, {transform_indices = @transform_3, window_bounds = array<i64: 8, 32>}, {transform_indices = @transform_4, window_bounds = array<i64: 8, 16>}]} {
    %c0 = arith.constant 0 : index
    %c0_0 = arith.constant 0 : index
    %0 = vector.load %arg1[%c0, %c0_0] : memref<8x16xf32, #tpu.memory_space<vmem>>, vector<8x16xf32>
    %c0_1 = arith.constant 0 : index
    %c0_2 = arith.constant 0 : index
    %1 = vector.load %arg2[%c0_1, %c0_2] : memref<16x32xf32, #tpu.memory_space<vmem>>, vector<16x32xf32>
    %cst = arith.constant dense<0.000000e+00> : vector<8x32xf32>
    %2 = tpu.matmul %0, %1, %cst {dimension_numbers = #tpu.dot_dimension_numbers<[1], [0], [0], [1], [0, 0, 1, 1], [], []>} : vector<8x16xf32>, vector<16x32xf32>, vector<8x32xf32> -> vector<8x32xf32>
    %c0_3 = arith.constant 0 : index
    %c0_4 = arith.constant 0 : index
    %3 = vector.load %arg4[%c0_3, %c0_4] : memref<8x32xf32, #tpu.memory_space<vmem>>, vector<8x32xf32>
    tpu.vector_store %arg4[%c0_3, %c0_4], %2 {strides = array<i32>} : memref<8x32xf32, #tpu.memory_space<vmem>>, vector<8x32xf32>,
    %c0_5 = arith.constant 0 : index
    %c0_6 = arith.constant 0 : index
    %4 = vector.load %arg3[%c0_5, %c0_6] : memref<32x16xf32, #tpu.memory_space<vmem>>, vector<32x16xf32>
    %cst_7 = arith.constant dense<0.000000e+00> : vector<8x16xf32>
    %5 = tpu.matmul %2, %4, %cst_7 {dimension_numbers = #tpu.dot_dimension_numbers<[1], [0], [0], [1], [0, 0, 1, 1], [], []>} : vector<8x32xf32>, vector<32x16xf32>, vector<8x16xf32> -> vector<8x16xf32>
    %c0_8 = arith.constant 0 : index
    %c0_9 = arith.constant 0 : index
    %6 = vector.load %arg5[%c0_8, %c0_9] : memref<8x16xf32, #tpu.memory_space<vmem>>, vector<8x16xf32>
    tpu.vector_store %arg5[%c0_8, %c0_9], %5 {strides = array<i32>} : memref<8x16xf32, #tpu.memory_space<vmem>>, vector<8x16xf32>,
    return
  }
  func.func @transform_0(%arg0: i32) -> (i32, i32) {
    %c0_i32 = arith.constant 0 : i32
    %c0_i32_0 = arith.constant 0 : i32
    return %arg0, %c0_i32 : i32, i32
  }
  func.func @transform_1(%arg0: i32) -> (i32, i32) {
    %c0_i32 = arith.constant 0 : i32
    %c0_i32_0 = arith.constant 0 : i32
    %c0_i32_1 = arith.constant 0 : i32
    return %c0_i32, %c0_i32_0 : i32, i32
  }
  func.func @transform_2(%arg0: i32) -> (i32, i32) {
    %c0_i32 = arith.constant 0 : i32
    %c0_i32_0 = arith.constant 0 : i32
    %c0_i32_1 = arith.constant 0 : i32
    return %c0_i32, %c0_i32_0 : i32, i32
  }
  func.func @transform_3(%arg0: i32) -> (i32, i32) {
    %c0_i32 = arith.constant 0 : i32
    %c0_i32_0 = arith.constant 0 : i32
    return %arg0, %c0_i32 : i32, i32
  }
  func.func @transform_4(%arg0: i32) -> (i32, i32) {
    %c0_i32 = arith.constant 0 : i32
    %c0_i32_0 = arith.constant 0 : i32
    return %arg0, %c0_i32 : i32, i32
  }
}

</mosaic_0001>

<llo_original>
// kernel: generator_forward.1
$region0: #{generator_forward.1}
  #allocation0 [shape = 'u32[]', space=smem, size = 0x4, offset = 0x4, fixed_abs, tag = 'smem constant byte address 0x4 - core index']
  #allocation1 [shape = 'u32[144,128]{1,0:T(1,128)}', space=vmem, size = 0x12000, scoped, tag = 'internal scratch']
  %s0 = inlined_call_operand.vmem [shape: f32[8,16], index: 0, kind: input, shape index: {}]
  %s1 = inlined_call_operand.vmem [shape: f32[16,32], index: 1, kind: input, shape index: {}]
  %s2 = inlined_call_operand.vmem [shape: f32[32,16], index: 2, kind: input, shape index: {}]
  %s3 = inlined_call_operand.hbm [shape: f32[8,32], index: 3, kind: output, shape index: {0}]
  %s4 = inlined_call_operand.hbm [shape: f32[8,16], index: 4, kind: output, shape index: {1}]
  %5 = xla_tuple %s3, %s4
  %s6 = sld [smem:[#allocation0]]
  $region30: #{generator_forward.1} parent=0
    _
  %s8 = ssub.s32 1, %s6
  %s9 = scalar_select 0, %s8, %s6
  $region1: #{generator_forward.1} parent=0
    #allocation2 [shape = 'u8[4096]{0}', space=vmem, size = 0x1000, scoped, tag = 'output window, operand 0, single buffered']
    #allocation3 [shape = 's32[1]{0}', space=sflag, size = 0x4, scoped, tag = 'scoped memory for generator_forward.1']
    #allocation4 [shape = 'u8[4096]{0}', space=vmem, size = 0x1000, scoped, tag = 'output window, operand 1, single buffered']
    #allocation5 [shape = 's32[1]{0}', space=sflag, size = 0x4, scoped, tag = 'scoped memory for generator_forward.1']
    %10 = vsyncpa [#allocation3], 0
    %11 = vsyncpa [#allocation5], 0
    // Predicated region
    $region2: #{generator_forward.1} parent=1 // pred_check
      _
    $region3: #{generator_forward.1} parent=1 // pred_check_branch
      %13 = sbr.rel (0) target = $region5
    $region4: #{generator_forward.1} parent=1 // pred_region
      _
    $region5: #{generator_forward.1} parent=1 // pred_fallthru
      _
    // Predicated region
    $region6: #{generator_forward.1} parent=1 // pred_check
      _
    $region7: #{generator_forward.1} parent=1 // pred_check_branch
      %15 = sbr.rel (0) target = $region9
    $region8: #{generator_forward.1} parent=1 // pred_region
      _
    $region9: #{generator_forward.1} parent=1 // pred_fallthru
      _
    // Predicated region
    $region10: #{generator_forward.1} parent=1 // pred_check
      _
    $region11: #{generator_forward.1} parent=1 // pred_check_branch
      %17 = sbr.rel (0) target = $region13
    $region12: #{generator_forward.1} parent=1 // pred_region
      _
    $region13: #{generator_forward.1} parent=1 // pred_fallthru
      _
    %v18 = vld [vmem:[%s0] sm:$0xff]
    %v19 = vld [vmem:[%s1] sm:$0xff]
    %v20 = vld [vmem:[%s1 + $0x8] sm:$0xff]
    %vm21 = vcmask 130048
    %v23 = vsel %vm21, %v18, 0
    %25 = vmatprep.subr.mxu0 0.0
    %26 = vmatpush1.msra.mxu0 %v19
    %27 = vmatprep.subr.mxu0 0.0
    %28 = vmatpush1.msra.mxu0 %v20
    %29 = vmatprep.subr.mxu0 0.0
    %30 = vmatpush1.msra.mxu0 0.0
    %31 = vmatprep.subr.mxu0 0.0
    %32 = vmatpush1.msra.mxu0 0.0
    %33 = vmatprep.subr.mxu0 0.0
    %34 = vmatpush1.msra.mxu0 0.0
    %35 = vmatprep.subr.mxu0 0.0
    %36 = vmatpush1.msra.mxu0 0.0
    %37 = vmatprep.subr.mxu0 0.0
    %38 = vmatpush1.msra.mxu0 0.0
    %39 = vmatprep.subr.mxu0 0.0
    %40 = vmatpush1.msra.mxu0 0.0
    %41 = vmatprep.subr.mxu0 0.0
    %42 = vmatpush1.msra.mxu0 0.0
    %43 = vmatprep.subr.mxu0 0.0
    %44 = vmatpush1.msra.mxu0 0.0
    %45 = vmatprep.subr.mxu0 0.0
    %46 = vmatpush1.msra.mxu0 0.0
    %47 = vmatprep.subr.mxu0 0.0
    %48 = vmatpush1.msra.mxu0 0.0
    %49 = vmatprep.subr.mxu0 0.0
    %50 = vmatpush1.msra.mxu0 0.0
    %51 = vmatprep.subr.mxu0 0.0
    %52 = vmatpush1.msra.mxu0 0.0
    %53 = vmatprep.subr.mxu0 0.0
    %54 = vmatpush1.msra.mxu0 0.0
    %55 = vmatprep.subr.mxu0 0.0
    %56 = vmatpush1.msra.mxu0 0.0
    %57 = vmatprep.subr.mxu0 0.0
    %58 = vmatpush1.msra.mxu0 0.0
    %59 = vmatprep.subr.mxu0 0.0
    %60 = vmatpush1.msra.mxu0 0.0
    %61 = vmatprep.subr.mxu0 0.0
    %62 = vmatpush1.msra.mxu0 0.0
    %63 = vmatprep.subr.mxu0 0.0
    %64 = vmatpush1.msra.mxu0 0.0
    %65 = vmatprep.subr.mxu0 0.0
    %66 = vmatpush1.msra.mxu0 0.0
    %67 = vmatprep.subr.mxu0 0.0
    %68 = vmatpush1.msra.mxu0 0.0
    %69 = vmatprep.subr.mxu0 0.0
    %70 = vmatpush1.msra.mxu0 0.0
    %71 = vmatprep.subr.mxu0 0.0
    %72 = vmatpush1.msra.mxu0 0.0
    %73 = vmatprep.subr.mxu0 0.0
    %74 = vmatpush1.msra.mxu0 0.0
    %75 = vmatprep.subr.mxu0 0.0
    %76 = vmatpush1.msra.mxu0 0.0
    %77 = vmatprep.subr.mxu0 0.0
    %78 = vmatpush1.msra.mxu0 0.0
    %79 = vmatprep.subr.mxu0 0.0
    %80 = vmatpush1.msra.mxu0 0.0
    %81 = vmatprep.subr.mxu0 0.0
    %82 = vmatpush1.msra.mxu0 0.0
    %83 = vmatprep.subr.mxu0 0.0
    %84 = vmatpush1.msra.mxu0 0.0
    %85 = vmatprep.subr.mxu0 0.0
    %86 = vmatpush1.msra.mxu0 0.0
    %87 = vmatprep.subr.mxu0 0.0
    %88 = vmatpush1.msra.mxu0 0.0
    %89 = vmatprep.mubr.f32.mxu0 0.0
    %90 = vmatmul.mubr.f32.gmra.mrb[0].mxu0 %v23
    %v91 = vpop.f32.mrb[0].mxu0
    %v92 = vadd.f32 0.0, %v91
    %v93 = vpop.f32.mrb[0].mxu0
    %94 = vdwg.mxu0
    %vm95 = vcmask 261120
    %96 = vst.msk [vmem:[#allocation2] sm:$0xff] %vm95, %v92
    %v97 = vld [vmem:[%s2] sm:$0xff]
    %v98 = vld [vmem:[%s2 + $0x8] sm:$0xff]
    %v99 = vld [vmem:[%s2 + $0x10] sm:$0xff]
    %v100 = vld [vmem:[%s2 + $0x18] sm:$0xff]
    %v102 = vsel %vm95, %v92, 0
    %104 = vmatprep.subr.mxu0 0.0
    %105 = vmatpush1.msra.mxu0 %v97
    %106 = vmatprep.subr.mxu0 0.0
    %107 = vmatpush1.msra.mxu0 %v98
    %108 = vmatprep.subr.mxu0 0.0
    %109 = vmatpush1.msra.mxu0 %v99
    %110 = vmatprep.subr.mxu0 0.0
    %111 = vmatpush1.msra.mxu0 %v100
    %112 = vmatprep.subr.mxu0 0.0
    %113 = vmatpush1.msra.mxu0 0.0
    %114 = vmatprep.subr.mxu0 0.0
    %115 = vmatpush1.msra.mxu0 0.0
    %116 = vmatprep.subr.mxu0 0.0
    %117 = vmatpush1.msra.mxu0 0.0
    %118 = vmatprep.subr.mxu0 0.0
    %119 = vmatpush1.msra.mxu0 0.0
    %120 = vmatprep.subr.mxu0 0.0
    %121 = vmatpush1.msra.mxu0 0.0
    %122 = vmatprep.subr.mxu0 0.0
    %123 = vmatpush1.msra.mxu0 0.0
    %124 = vmatprep.subr.mxu0 0.0
    %125 = vmatpush1.msra.mxu0 0.0
    %126 = vmatprep.subr.mxu0 0.0
    %127 = vmatpush1.msra.mxu0 0.0
    %128 = vmatprep.subr.mxu0 0.0
    %129 = vmatpush1.msra.mxu0 0.0
    %130 = vmatprep.subr.mxu0 0.0
    %131 = vmatpush1.msra.mxu0 0.0
    %132 = vmatprep.subr.mxu0 0.0
    %133 = vmatpush1.msra.mxu0 0.0
    %134 = vmatprep.subr.mxu0 0.0
    %135 = vmatpush1.msra.mxu0 0.0
    %136 = vmatprep.subr.mxu0 0.0
    %137 = vmatpush1.msra.mxu0 0.0
    %138 = vmatprep.subr.mxu0 0.0
    %139 = vmatpush1.msra.mxu0 0.0
    %140 = vmatprep.subr.mxu0 0.0
    %141 = vmatpush1.msra.mxu0 0.0
    %142 = vmatprep.subr.mxu0 0.0
    %143 = vmatpush1.msra.mxu0 0.0
    %144 = vmatprep.subr.mxu0 0.0
    %145 = vmatpush1.msra.mxu0 0.0
    %146 = vmatprep.subr.mxu0 0.0
    %147 = vmatpush1.msra.mxu0 0.0
    %148 = vmatprep.subr.mxu0 0.0
    %149 = vmatpush1.msra.mxu0 0.0
    %150 = vmatprep.subr.mxu0 0.0
    %151 = vmatpush1.msra.mxu0 0.0
    %152 = vmatprep.subr.mxu0 0.0
    %153 = vmatpush1.msra.mxu0 0.0
    %154 = vmatprep.subr.mxu0 0.0
    %155 = vmatpush1.msra.mxu0 0.0
    %156 = vmatprep.subr.mxu0 0.0
    %157 = vmatpush1.msra.mxu0 0.0
    %158 = vmatprep.subr.mxu0 0.0
    %159 = vmatpush1.msra.mxu0 0.0
    %160 = vmatprep.subr.mxu0 0.0
    %161 = vmatpush1.msra.mxu0 0.0
    %162 = vmatprep.subr.mxu0 0.0
    %163 = vmatpush1.msra.mxu0 0.0
    %164 = vmatprep.subr.mxu0 0.0
    %165 = vmatpush1.msra.mxu0 0.0
    %166 = vmatprep.subr.mxu0 0.0
    %167 = vmatpush1.msra.mxu0 0.0
    %168 = vmatprep.mubr.f32.mxu0 0.0
    %169 = vmatmul.mubr.f32.gmra.mrb[0].mxu0 %v102
    %v170 = vpop.f32.mrb[0].mxu0
    %v171 = vadd.f32 0.0, %v170
    %v172 = vpop.f32.mrb[0].mxu0
    %173 = vdwg.mxu0
    %174 = vst.msk [vmem:[#allocation4] sm:$0xff] %vm21, %v171
    // Predicated region
    $region14: #{generator_forward.1} parent=1 // pred_check
      _
    $region15: #{generator_forward.1} parent=1 // pred_check_branch
      %176 = sbr.rel (0) target = $region17
    $region16: #{generator_forward.1} parent=1 // pred_region
      %s178 = ssub.s32 128, 128
      %179 = vsyncadd [#allocation3], %s178
      %s181 = sshll.u32 [#allocation2], 4
      %s182 = int_to_ptr.vmem [resolvable:$true] %s181
      %184 = dma.vmem_to_hbm [thread:$0]  %s182, 128, %s3, [#allocation3]
    $region17: #{generator_forward.1} parent=1 // pred_fallthru
      _
    // Predicated region
    $region18: #{generator_forward.1} parent=1 // pred_check
      _
    $region19: #{generator_forward.1} parent=1 // pred_check_branch
      %186 = sbr.rel (0) target = $region21
    $region20: #{generator_forward.1} parent=1 // pred_region
      %s188 = ssub.s32 128, 128
      %189 = vsyncadd [#allocation5], %s188
      %s191 = sshll.u32 [#allocation4], 4
      %s192 = int_to_ptr.vmem [resolvable:$true] %s191
      %194 = dma.vmem_to_hbm [thread:$0]  %s192, 128, %s4, [#allocation5]
    $region21: #{generator_forward.1} parent=1 // pred_fallthru
      _
    // Predicated region
    $region22: #{generator_forward.1} parent=1 // pred_check
      _
    $region23: #{generator_forward.1} parent=1 // pred_check_branch
      %196 = sbr.rel (0) target = $region25
    $region24: #{generator_forward.1} parent=1 // pred_region
      %197 = dma.done [#allocation3], 128
    $region25: #{generator_forward.1} parent=1 // pred_fallthru
      _
    // Predicated region
    $region26: #{generator_forward.1} parent=1 // pred_check
      _
    $region27: #{generator_forward.1} parent=1 // pred_check_branch
      %199 = sbr.rel (0) target = $region29
    $region28: #{generator_forward.1} parent=1 // pred_region
      %200 = dma.done [#allocation5], 128
    $region29: #{generator_forward.1} parent=1 // pred_fallthru
      _
    %201 = vsyncpa [#allocation3], 1
    %202 = vsyncpa [#allocation5], 1

</llo_original>
